<compile_context>
chip_gen: v7x
topology: tpu7x:2x2x1
jax: 0.10.0
libtpu: 0.0.40
codegen_flags: <defaults>
</compile_context>

<pallas_src>
import functools

import jax
import jax.numpy as jnp
from jax import lax
from jax.experimental import pallas as pl
from jax.experimental.pallas import tpu as pltpu

LANE = 128      # output channels are zero-padded to a multiple of the lane width
SUBLANE = 8     # sublane alignment for the valid-row offset in the pad scratch


def _round_up(x, m):
    return ((x + m - 1) // m) * m


def _block_geometry(kernel_size, dilation, L):
    """'same' conv geometry (matches PyTorch padding='same', stride=1)."""
    total = dilation * (kernel_size - 1)
    left = total // 2
    right = total - left
    off = _round_up(left, SUBLANE)      # sublane-aligned start of the valid rows
    return left, right, off, off + L + right


# ------------------------------ fused kernel --------------------------------


def _tcn_kernel(*refs, nblocks, K, dilations, L, TB, c_real, compute_dtype):
    """Fused TCN forward for one batch tile.

    refs = (x_ref, [w1, b1, w2, b2, wr, br] * nblocks, out_ref, buf)

      x_ref   : (TB, L, C0)        f32, channels-last, REAL channel count
      w1_i    : (K*Ci, Cop)        tap-packed (im2col) conv1 weight, compute_dtype
      b1_i    : (1, Cop)           f32
      w2_i    : (K*Co, Cop)        tap-packed conv2 weight, compute_dtype
      b2_i    : (1, Cop)           f32
      wr_i    : (Ci, Cop)          1x1 residual conv weight, compute_dtype
      br_i    : (1, Cop)           f32
      out_ref : (TB, L, Cn)        f32, REAL output channels only
      buf     : (TB, Lp_max, Cbuf) compute_dtype VMEM scratch, reused by every
                                   block for both conv inputs (zero halos give
                                   the 'same' padding).
    """
    x_ref = refs[0]
    wrefs = refs[1:1 + 6 * nblocks]
    out_ref = refs[1 + 6 * nblocks]
    buf = refs[2 + 6 * nblocks]

    M = TB * L
    cbuf = buf.shape[2]

    cur = x_ref[...].reshape(M, x_ref.shape[2])             # (M, C0) f32

    for i in range(nblocks):
        w1, b1, w2, b2, wr, br = wrefs[6 * i:6 * i + 6]
        ci, co = c_real[i]                                   # real channel counts
        d = dilations[i]
        left, right, off, _ = _block_geometry(K, d, L)

        # Zero only the halo rows that the taps actually read (dense stores).
        if left:
            buf[:, off - left:off, :] = jnp.zeros((TB, left, cbuf), buf.dtype)
        if right:
            buf[:, off + L:off + L + right, :] = jnp.zeros(
                (TB, right, cbuf), buf.dtype)

        def stash(val_2d):
            """Write an (M, W) activation into the valid rows of buf."""
            w = val_2d.shape[1]
            buf[:, off:off + L, :w] = val_2d.reshape(TB, L, w)

        def conv_same(w_ref, cin):
            """'same' dilated conv as ONE MXU dot: the K taps are packed along
            the contraction (im2col); contraction = K * cin (real channels)."""
            taps = [buf[:, off - left + k * d: off - left + k * d + L, :cin]
                    for k in range(K)]
            a = jnp.concatenate(taps, axis=-1).reshape(M, K * cin)
            return jnp.dot(a, w_ref[...], preferred_element_type=jnp.float32)

        # conv1 (dilated, 'same') + bias + ReLU
        x_cd = cur.astype(compute_dtype)                     # (M, >=ci)
        stash(x_cd)
        h1 = jnp.maximum(conv_same(w1, ci) + b1[...], 0.0)   # (M, Cop) f32

        # 1x1 residual conv (reuses the already-cast conv1 input)
        res = jnp.dot(x_cd[:, :ci], wr[...],
                      preferred_element_type=jnp.float32) + br[...]

        # conv2 (dilated, 'same') + bias + ReLU (halo rows are still zero)
        stash(h1.astype(compute_dtype))
        h2 = jnp.maximum(conv_same(w2, co) + b2[...], 0.0)

        cur = h2 + res                                       # (M, Cop) f32

    cn = out_ref.shape[2]
    out_ref[...] = cur[:, :cn].reshape(TB, L, cn).astype(out_ref.dtype)


# ------------------------- parameter construction ---------------------------


def _weight_norm_conv_weight(key, out_c, in_c, k):
    """torch weight_norm(nn.Conv1d): weight = g * v / ||v||, init g = ||v||."""
    v = 0.1 * jax.random.normal(key, (out_c, in_c, k), jnp.float32)
    norm = jnp.sqrt(jnp.sum(v * v, axis=(1, 2), keepdims=True))
    g = norm[:, 0, 0]
    return g[:, None, None] * v / norm        # (out_c, in_c, k), PyTorch layout


def make_tcn_params(key, in_dims, out_dims, kernel_size):
    """PyTorch-layout parameters for every Conv1DResidualBlock."""
    params = []
    for i, (ci, co) in enumerate(zip(in_dims, out_dims)):
        keys = jax.random.split(jax.random.fold_in(key, i), 6)
        w1 = _weight_norm_conv_weight(keys[0], co, ci, kernel_size)
        b1 = 0.05 * jax.random.normal(keys[1], (co,), jnp.float32)
        w2 = _weight_norm_conv_weight(keys[2], co, co, kernel_size)
        b2 = 0.05 * jax.random.normal(keys[3], (co,), jnp.float32)
        wr = 0.1 * jax.random.normal(keys[4], (co, ci, 1), jnp.float32)
        br = 0.05 * jax.random.normal(keys[5], (co,), jnp.float32)
        params.append((w1, b1, w2, b2, wr, br))
    return params


def _prepare_kernel_params(torch_params, K, compute_dtype):
    """Tap-pack (im2col) the conv weights, lane-pad output channels, cast."""
    flat, c_real = [], []
    for (w1, b1, w2, b2, wr, br) in torch_params:
        co, ci, _ = w1.shape
        cop = _round_up(co, LANE)
        pad_o = ((0, 0), (0, cop - co))
        # rows ordered (tap k, in-channel c) to match the in-kernel tap concat
        w1k = jnp.pad(jnp.transpose(w1, (2, 1, 0)).reshape(K * ci, co),
                      pad_o).astype(compute_dtype)
        w2k = jnp.pad(jnp.transpose(w2, (2, 1, 0)).reshape(K * co, co),
                      pad_o).astype(compute_dtype)
        wrk = jnp.pad(wr[:, :, 0].T, pad_o).astype(compute_dtype)
        b1k = jnp.pad(b1, (0, cop - co))[None, :].astype(jnp.float32)
        b2k = jnp.pad(b2, (0, cop - co))[None, :].astype(jnp.float32)
        brk = jnp.pad(br, (0, cop - co))[None, :].astype(jnp.float32)
        flat += [w1k, b1k, w2k, b2k, wrk, brk]
        c_real.append((ci, co))
    return flat, c_real


# ------------------------- generation-aware tiling ---------------------------


def _hardware_profile():
    """Generation-aware (vmem_budget_bytes, num_tensorcores), safe fallback."""
    vmem_cap = 64 << 20
    try:
        info = pltpu.get_tpu_info()
        vmem_cap = int(getattr(info, "vmem_capacity_bytes", vmem_cap))
    except Exception:
        pass
    if vmem_cap <= (96 << 20):          # v7x-class: 64 MiB VMEM, 2 TensorCores
        return (56 << 20), 2
    return (104 << 20), 1               # v5e / v6e: 128 MiB VMEM, single core


def _choose_batch_tile(B, L, num_tc):
    """Single-core parts: large M = TB*L (amortize per-step overhead / weight
    pushes).  Dual-core parts: >= 2 grid steps per TensorCore when the batch
    allows it without shrinking M below a healthy row count."""
    target_rows = 1024 if num_tc == 1 else 512
    tb = max(1, min(B, max(1, target_rows // max(L, 1))))
    while B % tb:
        tb -= 1
    min_steps = 2 * num_tc
    while tb > 1 and (B // tb) < min_steps and (tb // 2) * L >= 256:
        tb //= 2
        while B % tb:
            tb -= 1
    return tb


# ------------------------------ TCN forward ---------------------------------


def tcn_forward(x_bcl, torch_params, kernel_size, compute_dtype=jnp.bfloat16):
    """x_bcl: (B, C, L) PyTorch Conv1d layout.  Returns (B, C_out_last, L)."""
    B, C0, L = x_bcl.shape
    nblocks = len(torch_params)
    dilations = tuple(2 ** i for i in range(nblocks))

    flat_w, c_real = _prepare_kernel_params(torch_params, kernel_size,
                                            compute_dtype)
    cn = c_real[-1][1]
    cbuf = max(_round_up(max(ci, co), LANE) for ci, co in c_real)
    lp_max = max(_block_geometry(kernel_size, d, L)[3] for d in dilations)

    vmem_budget, num_tc = _hardware_profile()
    TB = _choose_batch_tile(B, L, num_tc)

    # channels-last, REAL channel count (no 128-lane pad round-trip in HBM).
    # TODO(synk): accept channels-last input upstream to drop this transpose.
    x = jnp.transpose(x_bcl, (0, 2, 1)).astype(jnp.float32)

    kern = functools.partial(
        _tcn_kernel, nblocks=nblocks, K=kernel_size, dilations=dilations,
        L=L, TB=TB, c_real=tuple(c_real), compute_dtype=compute_dtype)

    # x/out are grid-blocked over the batch; small weights/biases are kept
    # whole-array resident in VMEM (single copy, never double-buffered).
    in_specs = [pl.BlockSpec((TB, L, C0), lambda b: (b, 0, 0))]
    in_specs += [pl.BlockSpec(memory_space=pltpu.MemorySpace.VMEM)
                 for _ in flat_w]

    flops = 0
    for (ci, co) in c_real:
        flops += 2 * B * L * kernel_size * ci * co      # conv1 (packed taps)
        flops += 2 * B * L * kernel_size * co * co      # conv2
        flops += 2 * B * L * ci * co                    # 1x1 residual
    weight_bytes = sum(a.size * a.dtype.itemsize for a in flat_w)
    io_bytes = B * L * (C0 + cn) * 4
    cdt_bytes = jnp.dtype(compute_dtype).itemsize
    est = (2 * TB * L * (C0 + cn) * 4          # double-buffered x/out tiles
           + weight_bytes                      # resident weights (single copy)
           + TB * lp_max * cbuf * cdt_bytes    # pad/im2col scratch
           + 8 * TB * L * cbuf * 4)            # headroom: live f32 intermediates
    vmem_limit = int(min(vmem_budget, max(32 << 20, 2 * est)))

    out = pl.pallas_call(
        kern,
        out_shape=jax.ShapeDtypeStruct((B, L, cn), jnp.float32),
        grid=(B // TB,),
        in_specs=in_specs,
        out_specs=pl.BlockSpec((TB, L, cn), lambda b: (b, 0, 0)),
        scratch_shapes=[pltpu.VMEM((TB, lp_max, cbuf), compute_dtype)],
        compiler_params=pltpu.CompilerParams(
            dimension_semantics=("parallel",),
            vmem_limit_bytes=vmem_limit),
        cost_estimate=pl.CostEstimate(
            flops=int(flops), transcendentals=0,
            bytes_accessed=int(io_bytes + weight_bytes)),
    )(x, *flat_w)

    return jnp.transpose(out, (0, 2, 1))


# --------------------------- pure-JAX reference ------------------------------


def _ref_conv1d_same(x, w, b, dilation):
    total = dilation * (w.shape[2] - 1)
    left = total // 2
    y = lax.conv_general_dilated(x, w, window_strides=(1,),
                                 padding=[(left, total - left)],
                                 rhs_dilation=(dilation,),
                                 dimension_numbers=('NCH', 'OIH', 'NCH'))
    return y + b[None, :, None]


def tcn_reference(x_bcl, torch_params, kernel_size):
    x = x_bcl.astype(jnp.float32)
    for i, (w1, b1, w2, b2, wr, br) in enumerate(torch_params):
        d = 2 ** i
        out = jax.nn.relu(_ref_conv1d_same(x, w1, b1, d))
        out = jax.nn.relu(_ref_conv1d_same(out, w2, b2, d))
        res = _ref_conv1d_same(x, wr, br, 1)
        x = out + res
    return x


# ---------------------------------- main -------------------------------------


if __name__ == "__main__":
    key = jax.random.PRNGKey(0)
    B, L = 2, 16
    in_dims = [4, 8]
    out_dims = [8, 4]
    kernel_size = 3

    k_x, k_p = jax.random.split(key)
    x = jax.random.normal(k_x, (B, in_dims[0], L), jnp.float32)   # (B, C, L)

    torch_params = make_tcn_params(k_p, in_dims, out_dims, kernel_size)
    y_ref = jax.block_until_ready(tcn_reference(x, torch_params, kernel_size))

    # f32 matmul path (tight tolerance vs. reference).
    y32 = jax.block_until_ready(
        tcn_forward(x, torch_params, kernel_size, compute_dtype=jnp.float32))
    assert y32.shape == (B, out_dims[-1], L), y32.shape
    assert jnp.allclose(y32, y_ref, rtol=2e-3, atol=2e-3), \
        float(jnp.max(jnp.abs(y32 - y_ref)))

    # bf16 default path (bf16 operands + scratch, f32 accumulation).
    y = jax.block_until_ready(tcn_forward(x, torch_params, kernel_size))
    assert y.shape == (B, out_dims[-1], L), y.shape
    assert jnp.allclose(y, y_ref, rtol=3e-2, atol=3e-2), \
        float(jnp.max(jnp.abs(y - y_ref)))

    print("KERNEL_OK")
</pallas_src>

<mosaic_0001>
module attributes {stable_mosaic.version = 11 : i64} {
  func.func @_tcn_kernel(%arg0: i32, %arg1: memref<2x16x4xf32, #tpu.memory_space<vmem>>, %arg2: memref<12x128xf32, #tpu.memory_space<vmem>>, %arg3: memref<1x128xf32, #tpu.memory_space<vmem>>, %arg4: memref<24x128xf32, #tpu.memory_space<vmem>>, %arg5: memref<1x128xf32, #tpu.memory_space<vmem>>, %arg6: memref<4x128xf32, #tpu.memory_space<vmem>>, %arg7: memref<1x128xf32, #tpu.memory_space<vmem>>, %arg8: memref<24x128xf32, #tpu.memory_space<vmem>>, %arg9: memref<1x128xf32, #tpu.memory_space<vmem>>, %arg10: memref<12x128xf32, #tpu.memory_space<vmem>>, %arg11: memref<1x128xf32, #tpu.memory_space<vmem>>, %arg12: memref<8x128xf32, #tpu.memory_space<vmem>>, %arg13: memref<1x128xf32, #tpu.memory_space<vmem>>, %arg14: memref<2x16x4xf32, #tpu.memory_space<vmem>>, %arg15: memref<2x26x128xf32, #tpu.memory_space<vmem>>) attributes {dimension_semantics = [#tpu.dimension_semantics<parallel>], iteration_bounds = array<i64: 1>, scalar_prefetch = 0 : i64, scratch_operands = 1 : i64, tpu.core_type = #tpu.core_type<tc>, window_params = [{transform_indices = @transform_0, window_bounds = array<i64: 2, 16, 4>}, {pipeline_mode = #tpu.pipeline_mode<synchronous>, transform_indices = @transform_1, window_bounds = array<i64: 12, 128>}, {pipeline_mode = #tpu.pipeline_mode<synchronous>, transform_indices = @transform_2, window_bounds = array<i64: 1, 128>}, {pipeline_mode = #tpu.pipeline_mode<synchronous>, transform_indices = @transform_3, window_bounds = array<i64: 24, 128>}, {pipeline_mode = #tpu.pipeline_mode<synchronous>, transform_indices = @transform_4, window_bounds = array<i64: 1, 128>}, {pipeline_mode = #tpu.pipeline_mode<synchronous>, transform_indices = @transform_5, window_bounds = array<i64: 4, 128>}, {pipeline_mode = #tpu.pipeline_mode<synchronous>, transform_indices = @transform_6, window_bounds = array<i64: 1, 128>}, {pipeline_mode = #tpu.pipeline_mode<synchronous>, transform_indices = @transform_7, window_bounds = array<i64: 24, 128>}, {pipeline_mode = #tpu.pipeline_mode<synchronous>, transform_indices = @transform_8, window_bounds = array<i64: 1, 128>}, {pipeline_mode = #tpu.pipeline_mode<synchronous>, transform_indices = @transform_9, window_bounds = array<i64: 12, 128>}, {pipeline_mode = #tpu.pipeline_mode<synchronous>, transform_indices = @transform_10, window_bounds = array<i64: 1, 128>}, {pipeline_mode = #tpu.pipeline_mode<synchronous>, transform_indices = @transform_11, window_bounds = array<i64: 8, 128>}, {pipeline_mode = #tpu.pipeline_mode<synchronous>, transform_indices = @transform_12, window_bounds = array<i64: 1, 128>}, {transform_indices = @transform_13, window_bounds = array<i64: 2, 16, 4>}]} {
    %c0 = arith.constant 0 : index
    %c0_0 = arith.constant 0 : index
    %c0_1 = arith.constant 0 : index
    %0 = vector.load %arg1[%c0, %c0_0, %c0_1] : memref<2x16x4xf32, #tpu.memory_space<vmem>>, vector<2x16x4xf32>
    %1 = vector.shape_cast %0 : vector<2x16x4xf32> to vector<32x4xf32>
    %cst = arith.constant 0.000000e+00 : f32
    %2 = vector.broadcast %cst : f32 to vector<2x1x128xf32>
    %c0_2 = arith.constant 0 : index
    %c7 = arith.constant 7 : index
    %c0_3 = arith.constant 0 : index
    %3 = vector.load %arg15[%c0_2, %c7, %c0_3] : memref<2x26x128xf32, #tpu.memory_space<vmem>>, vector<2x1x128xf32>
    tpu.vector_store %arg15[%c0_2, %c7, %c0_3], %2 {strides = array<i32>} : memref<2x26x128xf32, #tpu.memory_space<vmem>>, vector<2x1x128xf32>,
    %cst_4 = arith.constant 0.000000e+00 : f32
    %4 = vector.broadcast %cst_4 : f32 to vector<2x1x128xf32>
    %c0_5 = arith.constant 0 : index
    %c24 = arith.constant 24 : index
    %c0_6 = arith.constant 0 : index
    %5 = vector.load %arg15[%c0_5, %c24, %c0_6] : memref<2x26x128xf32, #tpu.memory_space<vmem>>, vector<2x1x128xf32>
    tpu.vector_store %arg15[%c0_5, %c24, %c0_6], %4 {strides = array<i32>} : memref<2x26x128xf32, #tpu.memory_space<vmem>>, vector<2x1x128xf32>,
    %6 = vector.shape_cast %1 : vector<32x4xf32> to vector<2x16x4xf32>
    %c0_7 = arith.constant 0 : index
    %c8 = arith.constant 8 : index
    %c0_8 = arith.constant 0 : index
    %7 = vector.load %arg15[%c0_7, %c8, %c0_8] : memref<2x26x128xf32, #tpu.memory_space<vmem>>, vector<2x16x4xf32>
    tpu.vector_store %arg15[%c0_7, %c8, %c0_8], %6 {strides = array<i32>} : memref<2x26x128xf32, #tpu.memory_space<vmem>>, vector<2x16x4xf32>,
    %c0_9 = arith.constant 0 : index
    %c7_10 = arith.constant 7 : index
    %c0_11 = arith.constant 0 : index
    %8 = vector.load %arg15[%c0_9, %c7_10, %c0_11] : memref<2x26x128xf32, #tpu.memory_space<vmem>>, vector<2x16x4xf32>
    %c0_12 = arith.constant 0 : index
    %c8_13 = arith.constant 8 : index
    %c0_14 = arith.constant 0 : index
    %9 = vector.load %arg15[%c0_12, %c8_13, %c0_14] : memref<2x26x128xf32, #tpu.memory_space<vmem>>, vector<2x16x4xf32>
    %c0_15 = arith.constant 0 : index
    %c9 = arith.constant 9 : index
    %c0_16 = arith.constant 0 : index
    %10 = vector.load %arg15[%c0_15, %c9, %c0_16] : memref<2x26x128xf32, #tpu.memory_space<vmem>>, vector<2x16x4xf32>
    %11 = tpu.concatenate %8, %9, %10 in 2 : vector<2x16x4xf32>, vector<2x16x4xf32>, vector<2x16x4xf32> -> vector<2x16x12xf32>
    %12 = vector.shape_cast %11 : vector<2x16x12xf32> to vector<32x12xf32>
    %c0_17 = arith.constant 0 : index
    %c0_18 = arith.constant 0 : index
    %13 = vector.load %arg2[%c0_17, %c0_18] : memref<12x128xf32, #tpu.memory_space<vmem>>, vector<12x128xf32>
    %cst_19 = arith.constant dense<0.000000e+00> : vector<32x128xf32>
    %14 = tpu.matmul %12, %13, %cst_19 {dimension_numbers = #tpu.dot_dimension_numbers<[1], [0], [0], [1], [0, 0, 1, 1], [], []>} : vector<32x12xf32>, vector<12x128xf32>, vector<32x128xf32> -> vector<32x128xf32>
    %c0_20 = arith.constant 0 : index
    %c0_21 = arith.constant 0 : index
    %15 = vector.load %arg3[%c0_20, %c0_21] : memref<1x128xf32, #tpu.memory_space<vmem>>, vector<1x128xf32>
    %16 = vector.broadcast %15 : vector<1x128xf32> to vector<32x128xf32>
    %17 = arith.addf %14, %16 : vector<32x128xf32>
    %cst_22 = arith.constant 0.000000e+00 : f32
    %18 = vector.broadcast %cst_22 : f32 to vector<32x128xf32>
    %19 = arith.maximumf %17, %18 : vector<32x128xf32>
    %c0_23 = arith.constant 0 : index
    %c0_24 = arith.constant 0 : index
    %20 = vector.load %arg6[%c0_23, %c0_24] : memref<4x128xf32, #tpu.memory_space<vmem>>, vector<4x128xf32>
    %cst_25 = arith.constant dense<0.000000e+00> : vector<32x128xf32>
    %21 = tpu.matmul %1, %20, %cst_25 {dimension_numbers = #tpu.dot_dimension_numbers<[1], [0], [0], [1], [0, 0, 1, 1], [], []>} : vector<32x4xf32>, vector<4x128xf32>, vector<32x128xf32> -> vector<32x128xf32>
    %c0_26 = arith.constant 0 : index
    %c0_27 = arith.constant 0 : index
    %22 = vector.load %arg7[%c0_26, %c0_27] : memref<1x128xf32, #tpu.memory_space<vmem>>, vector<1x128xf32>
    %23 = vector.broadcast %22 : vector<1x128xf32> to vector<32x128xf32>
    %24 = arith.addf %21, %23 : vector<32x128xf32>
    %25 = vector.shape_cast %19 : vector<32x128xf32> to vector<2x16x128xf32>
    %c0_28 = arith.constant 0 : index
    %c8_29 = arith.constant 8 : index
    %c0_30 = arith.constant 0 : index
    %26 = vector.load %arg15[%c0_28, %c8_29, %c0_30] : memref<2x26x128xf32, #tpu.memory_space<vmem>>, vector<2x16x128xf32>
    tpu.vector_store %arg15[%c0_28, %c8_29, %c0_30], %25 {strides = array<i32>} : memref<2x26x128xf32, #tpu.memory_space<vmem>>, vector<2x16x128xf32>,
    %c0_31 = arith.constant 0 : index
    %c7_32 = arith.constant 7 : index
    %c0_33 = arith.constant 0 : index
    %27 = vector.load %arg15[%c0_31, %c7_32, %c0_33] : memref<2x26x128xf32, #tpu.memory_space<vmem>>, vector<2x16x8xf32>
    %c0_34 = arith.constant 0 : index
    %c8_35 = arith.constant 8 : index
    %c0_36 = arith.constant 0 : index
    %28 = vector.load %arg15[%c0_34, %c8_35, %c0_36] : memref<2x26x128xf32, #tpu.memory_space<vmem>>, vector<2x16x8xf32>
    %c0_37 = arith.constant 0 : index
    %c9_38 = arith.constant 9 : index
    %c0_39 = arith.constant 0 : index
    %29 = vector.load %arg15[%c0_37, %c9_38, %c0_39] : memref<2x26x128xf32, #tpu.memory_space<vmem>>, vector<2x16x8xf32>
    %30 = tpu.concatenate %27, %28, %29 in 2 : vector<2x16x8xf32>, vector<2x16x8xf32>, vector<2x16x8xf32> -> vector<2x16x24xf32>
    %31 = vector.shape_cast %30 : vector<2x16x24xf32> to vector<32x24xf32>
    %c0_40 = arith.constant 0 : index
    %c0_41 = arith.constant 0 : index
    %32 = vector.load %arg4[%c0_40, %c0_41] : memref<24x128xf32, #tpu.memory_space<vmem>>, vector<24x128xf32>
    %cst_42 = arith.constant dense<0.000000e+00> : vector<32x128xf32>
    %33 = tpu.matmul %31, %32, %cst_42 {dimension_numbers = #tpu.dot_dimension_numbers<[1], [0], [0], [1], [0, 0, 1, 1], [], []>} : vector<32x24xf32>, vector<24x128xf32>, vector<32x128xf32> -> vector<32x128xf32>
    %c0_43 = arith.constant 0 : index
    %c0_44 = arith.constant 0 : index
    %34 = vector.load %arg5[%c0_43, %c0_44] : memref<1x128xf32, #tpu.memory_space<vmem>>, vector<1x128xf32>
    %35 = vector.broadcast %34 : vector<1x128xf32> to vector<32x128xf32>
    %36 = arith.addf %33, %35 : vector<32x128xf32>
    %cst_45 = arith.constant 0.000000e+00 : f32
    %37 = vector.broadcast %cst_45 : f32 to vector<32x128xf32>
    %38 = arith.maximumf %36, %37 : vector<32x128xf32>
    %39 = arith.addf %38, %24 : vector<32x128xf32>
    %cst_46 = arith.constant 0.000000e+00 : f32
    %40 = vector.broadcast %cst_46 : f32 to vector<2x2x128xf32>
    %c0_47 = arith.constant 0 : index
    %c6 = arith.constant 6 : index
    %c0_48 = arith.constant 0 : index
    %41 = vector.load %arg15[%c0_47, %c6, %c0_48] : memref<2x26x128xf32, #tpu.memory_space<vmem>>, vector<2x2x128xf32>
    tpu.vector_store %arg15[%c0_47, %c6, %c0_48], %40 {strides = array<i32>} : memref<2x26x128xf32, #tpu.memory_space<vmem>>, vector<2x2x128xf32>,
    %cst_49 = arith.constant 0.000000e+00 : f32
    %42 = vector.broadcast %cst_49 : f32 to vector<2x2x128xf32>
    %c0_50 = arith.constant 0 : index
    %c24_51 = arith.constant 24 : index
    %c0_52 = arith.constant 0 : index
    %43 = vector.load %arg15[%c0_50, %c24_51, %c0_52] : memref<2x26x128xf32, #tpu.memory_space<vmem>>, vector<2x2x128xf32>
    tpu.vector_store %arg15[%c0_50, %c24_51, %c0_52], %42 {strides = array<i32>} : memref<2x26x128xf32, #tpu.memory_space<vmem>>, vector<2x2x128xf32>,
    %44 = vector.shape_cast %39 : vector<32x128xf32> to vector<2x16x128xf32>
    %c0_53 = arith.constant 0 : index
    %c8_54 = arith.constant 8 : index
    %c0_55 = arith.constant 0 : index
    %45 = vector.load %arg15[%c0_53, %c8_54, %c0_55] : memref<2x26x128xf32, #tpu.memory_space<vmem>>, vector<2x16x128xf32>
    tpu.vector_store %arg15[%c0_53, %c8_54, %c0_55], %44 {strides = array<i32>} : memref<2x26x128xf32, #tpu.memory_space<vmem>>, vector<2x16x128xf32>,
    %c0_56 = arith.constant 0 : index
    %c6_57 = arith.constant 6 : index
    %c0_58 = arith.constant 0 : index
    %46 = vector.load %arg15[%c0_56, %c6_57, %c0_58] : memref<2x26x128xf32, #tpu.memory_space<vmem>>, vector<2x16x8xf32>
    %c0_59 = arith.constant 0 : index
    %c8_60 = arith.constant 8 : index
    %c0_61 = arith.constant 0 : index
    %47 = vector.load %arg15[%c0_59, %c8_60, %c0_61] : memref<2x26x128xf32, #tpu.memory_space<vmem>>, vector<2x16x8xf32>
    %c0_62 = arith.constant 0 : index
    %c10 = arith.constant 10 : index
    %c0_63 = arith.constant 0 : index
    %48 = vector.load %arg15[%c0_62, %c10, %c0_63] : memref<2x26x128xf32, #tpu.memory_space<vmem>>, vector<2x16x8xf32>
    %49 = tpu.concatenate %46, %47, %48 in 2 : vector<2x16x8xf32>, vector<2x16x8xf32>, vector<2x16x8xf32> -> vector<2x16x24xf32>
    %50 = vector.shape_cast %49 : vector<2x16x24xf32> to vector<32x24xf32>
    %c0_64 = arith.constant 0 : index
    %c0_65 = arith.constant 0 : index
    %51 = vector.load %arg8[%c0_64, %c0_65] : memref<24x128xf32, #tpu.memory_space<vmem>>, vector<24x128xf32>
    %cst_66 = arith.constant dense<0.000000e+00> : vector<32x128xf32>
    %52 = tpu.matmul %50, %51, %cst_66 {dimension_numbers = #tpu.dot_dimension_numbers<[1], [0], [0], [1], [0, 0, 1, 1], [], []>} : vector<32x24xf32>, vector<24x128xf32>, vector<32x128xf32> -> vector<32x128xf32>
    %c0_67 = arith.constant 0 : index
    %c0_68 = arith.constant 0 : index
    %53 = vector.load %arg9[%c0_67, %c0_68] : memref<1x128xf32, #tpu.memory_space<vmem>>, vector<1x128xf32>
    %54 = vector.broadcast %53 : vector<1x128xf32> to vector<32x128xf32>
    %55 = arith.addf %52, %54 : vector<32x128xf32>
    %cst_69 = arith.constant 0.000000e+00 : f32
    %56 = vector.broadcast %cst_69 : f32 to vector<32x128xf32>
    %57 = arith.maximumf %55, %56 : vector<32x128xf32>
    %58 = vector.extract_strided_slice %39 {offsets = [0, 0], sizes = [32, 8], strides = [1, 1]} : vector<32x128xf32> to vector<32x8xf32>
    %c0_70 = arith.constant 0 : index
    %c0_71 = arith.constant 0 : index
    %59 = vector.load %arg12[%c0_70, %c0_71] : memref<8x128xf32, #tpu.memory_space<vmem>>, vector<8x128xf32>
    %cst_72 = arith.constant dense<0.000000e+00> : vector<32x128xf32>
    %60 = tpu.matmul %58, %59, %cst_72 {dimension_numbers = #tpu.dot_dimension_numbers<[1], [0], [0], [1], [0, 0, 1, 1], [], []>} : vector<32x8xf32>, vector<8x128xf32>, vector<32x128xf32> -> vector<32x128xf32>
    %c0_73 = arith.constant 0 : index
    %c0_74 = arith.constant 0 : index
    %61 = vector.load %arg13[%c0_73, %c0_74] : memref<1x128xf32, #tpu.memory_space<vmem>>, vector<1x128xf32>
    %62 = vector.broadcast %61 : vector<1x128xf32> to vector<32x128xf32>
    %63 = arith.addf %60, %62 : vector<32x128xf32>
    %64 = vector.shape_cast %57 : vector<32x128xf32> to vector<2x16x128xf32>
    %c0_75 = arith.constant 0 : index
    %c8_76 = arith.constant 8 : index
    %c0_77 = arith.constant 0 : index
    %65 = vector.load %arg15[%c0_75, %c8_76, %c0_77] : memref<2x26x128xf32, #tpu.memory_space<vmem>>, vector<2x16x128xf32>
    tpu.vector_store %arg15[%c0_75, %c8_76, %c0_77], %64 {strides = array<i32>} : memref<2x26x128xf32, #tpu.memory_space<vmem>>, vector<2x16x128xf32>,
    %c0_78 = arith.constant 0 : index
    %c6_79 = arith.constant 6 : index
    %c0_80 = arith.constant 0 : index
    %66 = vector.load %arg15[%c0_78, %c6_79, %c0_80] : memref<2x26x128xf32, #tpu.memory_space<vmem>>, vector<2x16x4xf32>
    %c0_81 = arith.constant 0 : index
    %c8_82 = arith.constant 8 : index
    %c0_83 = arith.constant 0 : index
    %67 = vector.load %arg15[%c0_81, %c8_82, %c0_83] : memref<2x26x128xf32, #tpu.memory_space<vmem>>, vector<2x16x4xf32>
    %c0_84 = arith.constant 0 : index
    %c10_85 = arith.constant 10 : index
    %c0_86 = arith.constant 0 : index
    %68 = vector.load %arg15[%c0_84, %c10_85, %c0_86] : memref<2x26x128xf32, #tpu.memory_space<vmem>>, vector<2x16x4xf32>
    %69 = tpu.concatenate %66, %67, %68 in 2 : vector<2x16x4xf32>, vector<2x16x4xf32>, vector<2x16x4xf32> -> vector<2x16x12xf32>
    %70 = vector.shape_cast %69 : vector<2x16x12xf32> to vector<32x12xf32>
    %c0_87 = arith.constant 0 : index
    %c0_88 = arith.constant 0 : index
    %71 = vector.load %arg10[%c0_87, %c0_88] : memref<12x128xf32, #tpu.memory_space<vmem>>, vector<12x128xf32>
    %cst_89 = arith.constant dense<0.000000e+00> : vector<32x128xf32>
    %72 = tpu.matmul %70, %71, %cst_89 {dimension_numbers = #tpu.dot_dimension_numbers<[1], [0], [0], [1], [0, 0, 1, 1], [], []>} : vector<32x12xf32>, vector<12x128xf32>, vector<32x128xf32> -> vector<32x128xf32>
    %c0_90 = arith.constant 0 : index
    %c0_91 = arith.constant 0 : index
    %73 = vector.load %arg11[%c0_90, %c0_91] : memref<1x128xf32, #tpu.memory_space<vmem>>, vector<1x128xf32>
    %74 = vector.broadcast %73 : vector<1x128xf32> to vector<32x128xf32>
    %75 = arith.addf %72, %74 : vector<32x128xf32>
    %cst_92 = arith.constant 0.000000e+00 : f32
    %76 = vector.broadcast %cst_92 : f32 to vector<32x128xf32>
    %77 = arith.maximumf %75, %76 : vector<32x128xf32>
    %78 = arith.addf %77, %63 : vector<32x128xf32>
    %79 = vector.extract_strided_slice %78 {offsets = [0, 0], sizes = [32, 4], strides = [1, 1]} : vector<32x128xf32> to vector<32x4xf32>
    %80 = vector.shape_cast %79 : vector<32x4xf32> to vector<2x16x4xf32>
    %c0_93 = arith.constant 0 : index
    %c0_94 = arith.constant 0 : index
    %c0_95 = arith.constant 0 : index
    %81 = vector.load %arg14[%c0_93, %c0_94, %c0_95] : memref<2x16x4xf32, #tpu.memory_space<vmem>>, vector<2x16x4xf32>
    tpu.vector_store %arg14[%c0_93, %c0_94, %c0_95], %80 {strides = array<i32>} : memref<2x16x4xf32, #tpu.memory_space<vmem>>, vector<2x16x4xf32>,
    return
  }
  func.func @transform_0(%arg0: i32) -> (i32, i32, i32) {
    %c0_i32 = arith.constant 0 : i32
    %c0_i32_0 = arith.constant 0 : i32
    %c0_i32_1 = arith.constant 0 : i32
    return %arg0, %c0_i32, %c0_i32_0 : i32, i32, i32
  }
  func.func @transform_1(%arg0: i32) -> (i32, i32) {
    %c0_i32 = arith.constant 0 : i32
    %c0_i32_0 = arith.constant 0 : i32
    %c0_i32_1 = arith.constant 0 : i32
    return %c0_i32, %c0_i32_0 : i32, i32
  }
  func.func @transform_2(%arg0: i32) -> (i32, i32) {
    %c0_i32 = arith.constant 0 : i32
    %c0_i32_0 = arith.constant 0 : i32
    %c0_i32_1 = arith.constant 0 : i32
    return %c0_i32, %c0_i32_0 : i32, i32
  }
  func.func @transform_3(%arg0: i32) -> (i32, i32) {
    %c0_i32 = arith.constant 0 : i32
    %c0_i32_0 = arith.constant 0 : i32
    %c0_i32_1 = arith.constant 0 : i32
    return %c0_i32, %c0_i32_0 : i32, i32
  }
  func.func @transform_4(%arg0: i32) -> (i32, i32) {
    %c0_i32 = arith.constant 0 : i32
    %c0_i32_0 = arith.constant 0 : i32
    %c0_i32_1 = arith.constant 0 : i32
    return %c0_i32, %c0_i32_0 : i32, i32
  }
  func.func @transform_5(%arg0: i32) -> (i32, i32) {
    %c0_i32 = arith.constant 0 : i32
    %c0_i32_0 = arith.constant 0 : i32
    %c0_i32_1 = arith.constant 0 : i32
    return %c0_i32, %c0_i32_0 : i32, i32
  }
  func.func @transform_6(%arg0: i32) -> (i32, i32) {
    %c0_i32 = arith.constant 0 : i32
    %c0_i32_0 = arith.constant 0 : i32
    %c0_i32_1 = arith.constant 0 : i32
    return %c0_i32, %c0_i32_0 : i32, i32
  }
  func.func @transform_7(%arg0: i32) -> (i32, i32) {
    %c0_i32 = arith.constant 0 : i32
    %c0_i32_0 = arith.constant 0 : i32
    %c0_i32_1 = arith.constant 0 : i32
    return %c0_i32, %c0_i32_0 : i32, i32
  }
  func.func @transform_8(%arg0: i32) -> (i32, i32) {
    %c0_i32 = arith.constant 0 : i32
    %c0_i32_0 = arith.constant 0 : i32
    %c0_i32_1 = arith.constant 0 : i32
    return %c0_i32, %c0_i32_0 : i32, i32
  }
  func.func @transform_9(%arg0: i32) -> (i32, i32) {
    %c0_i32 = arith.constant 0 : i32
    %c0_i32_0 = arith.constant 0 : i32
    %c0_i32_1 = arith.constant 0 : i32
    return %c0_i32, %c0_i32_0 : i32, i32
  }
  func.func @transform_10(%arg0: i32) -> (i32, i32) {
    %c0_i32 = arith.constant 0 : i32
    %c0_i32_0 = arith.constant 0 : i32
    %c0_i32_1 = arith.constant 0 : i32
    return %c0_i32, %c0_i32_0 : i32, i32
  }
  func.func @transform_11(%arg0: i32) -> (i32, i32) {
    %c0_i32 = arith.constant 0 : i32
    %c0_i32_0 = arith.constant 0 : i32
    %c0_i32_1 = arith.constant 0 : i32
    return %c0_i32, %c0_i32_0 : i32, i32
  }
  func.func @transform_12(%arg0: i32) -> (i32, i32) {
    %c0_i32 = arith.constant 0 : i32
    %c0_i32_0 = arith.constant 0 : i32
    %c0_i32_1 = arith.constant 0 : i32
    return %c0_i32, %c0_i32_0 : i32, i32
  }
  func.func @transform_13(%arg0: i32) -> (i32, i32, i32) {
    %c0_i32 = arith.constant 0 : i32
    %c0_i32_0 = arith.constant 0 : i32
    %c0_i32_1 = arith.constant 0 : i32
    return %arg0, %c0_i32, %c0_i32_0 : i32, i32, i32
  }
}

</mosaic_0001>

<llo_original>
// kernel: tpu_custom_call.1
$region0: #{tpu_custom_call.1}
  #allocation0 [shape = 'u32[]', space=smem, size = 0x4, offset = 0x4, fixed_abs, tag = 'smem constant byte address 0x4 - core index']
  #allocation1 [shape = 'u32[144,128]{1,0:T(1,128)}', space=vmem, size = 0x12000, scoped, tag = 'internal scratch']
  #allocation2 [shape = 'f32[2,26,128]{2,1,0:T(8,128)}', space=vmem, size = 0x8000, scoped, tag = 'scratch operand']
  %s0 = inlined_call_operand.vmem [shape: f32[2,16,4], index: 0, kind: input, shape index: {}]
  %s1 = inlined_call_operand.hbm [shape: f32[12,128], index: 1, kind: input, shape index: {}]
  %s2 = inlined_call_operand.vmem [shape: f32[1,128], index: 2, kind: input, shape index: {}]
  %s3 = inlined_call_operand.vmem [shape: f32[24,128], index: 3, kind: input, shape index: {}]
  %s4 = inlined_call_operand.vmem [shape: f32[1,128], index: 4, kind: input, shape index: {}]
  %s5 = inlined_call_operand.hbm [shape: f32[4,128], index: 5, kind: input, shape index: {}]
  %s6 = inlined_call_operand.hbm [shape: f32[1,128], index: 6, kind: input, shape index: {}]
  %s7 = inlined_call_operand.vmem [shape: f32[24,128], index: 7, kind: input, shape index: {}]
  %s8 = inlined_call_operand.hbm [shape: f32[1,128], index: 8, kind: input, shape index: {}]
  %s9 = inlined_call_operand.vmem [shape: f32[12,128], index: 9, kind: input, shape index: {}]
  %s10 = inlined_call_operand.vmem [shape: f32[1,128], index: 10, kind: input, shape index: {}]
  %s11 = inlined_call_operand.vmem [shape: f32[8,128], index: 11, kind: input, shape index: {}]
  %s12 = inlined_call_operand.vmem [shape: f32[1,128], index: 12, kind: input, shape index: {}]
  %s13 = inlined_call_operand.vmem [shape: f32[2,16,4], index: 13, kind: output, shape index: {}]
  %s14 = sld [smem:[#allocation0]]
  $region78: #{tpu_custom_call.1} parent=0
    _
  %s16 = ssub.s32 1, %s14
  %s17 = scalar_select 0, %s16, %s14
  $region1: #{tpu_custom_call.1} parent=0
    #allocation3 [shape = 'u8[8192]{0}', space=vmem, size = 0x2000, scoped, tag = 'input window, operand 1, single buffered']
    #allocation4 [shape = 's32[1]{0}', space=sflag, size = 0x4, scoped, tag = 'scoped memory for tpu_custom_call.1']
    #allocation5 [shape = 'u8[2048]{0}', space=vmem, size = 0x800, scoped, tag = 'input window, operand 5, single buffered']
    #allocation6 [shape = 's32[1]{0}', space=sflag, size = 0x4, scoped, tag = 'scoped memory for tpu_custom_call.1']
    #allocation7 [shape = 'u8[512]{0}', space=vmem, size = 0x400, scoped, tag = 'input window, operand 6, single buffered']
    #allocation8 [shape = 'u8[512]{0}', space=vmem, size = 0x400, scoped, tag = 'input window, operand 8, single buffered']
    #allocation9 [shape = 's32[1]{0}', space=sflag, size = 0x4, scoped, tag = 'scoped memory for tpu_custom_call.1']
    %18 = vsyncpa [#allocation4], 0
    %19 = vsyncpa [#allocation6], 0
    %20 = vsyncpa [#allocation9], 0
    // Predicated region
    $region2: #{tpu_custom_call.1} parent=1 // pred_check
      _
    $region3: #{tpu_custom_call.1} parent=1 // pred_check_branch
      %22 = sbr.rel (0) target = $region5
    $region4: #{tpu_custom_call.1} parent=1 // pred_region
      _
    $region5: #{tpu_custom_call.1} parent=1 // pred_fallthru
      _
    // Predicated region
    $region6: #{tpu_custom_call.1} parent=1 // pred_check
      _
    $region7: #{tpu_custom_call.1} parent=1 // pred_check_branch
      %24 = sbr.rel (0) target = $region9
    $region8: #{tpu_custom_call.1} parent=1 // pred_region
      %s26 = ssub.s32 256, 256
      %27 = vsyncadd [#allocation4], %s26
      %s28 = sshll.u32 [#allocation3], 4
      %s29 = int_to_ptr.vmem [resolvable:$true] %s28
      %34 = dma.hbm_to_vmem [thread:$0]  %s1, 256, %s29, [#allocation4], 128, 128, 8
    $region9: #{tpu_custom_call.1} parent=1 // pred_fallthru
      _
    // Predicated region
    $region10: #{tpu_custom_call.1} parent=1 // pred_check
      _
    $region11: #{tpu_custom_call.1} parent=1 // pred_check_branch
      %36 = sbr.rel (0) target = $region13
    $region12: #{tpu_custom_call.1} parent=1 // pred_region
      _
    $region13: #{tpu_custom_call.1} parent=1 // pred_fallthru
      _
    // Predicated region
    $region14: #{tpu_custom_call.1} parent=1 // pred_check
      _
    $region15: #{tpu_custom_call.1} parent=1 // pred_check_branch
      %38 = sbr.rel (0) target = $region17
    $region16: #{tpu_custom_call.1} parent=1 // pred_region
      _
    $region17: #{tpu_custom_call.1} parent=1 // pred_fallthru
      _
    // Predicated region
    $region18: #{tpu_custom_call.1} parent=1 // pred_check
      _
    $region19: #{tpu_custom_call.1} parent=1 // pred_check_branch
      %40 = sbr.rel (0) target = $region21
    $region20: #{tpu_custom_call.1} parent=1 // pred_region
      _
    $region21: #{tpu_custom_call.1} parent=1 // pred_fallthru
      _
    // Predicated region
    $region22: #{tpu_custom_call.1} parent=1 // pred_check
      _
    $region23: #{tpu_custom_call.1} parent=1 // pred_check_branch
      %42 = sbr.rel (0) target = $region25
    $region24: #{tpu_custom_call.1} parent=1 // pred_region
      %s44 = ssub.s32 64, 64
      %45 = vsyncadd [#allocation6], %s44
      %s47 = sshll.u32 [#allocation5], 4
      %s48 = int_to_ptr.vmem [resolvable:$true] %s47
      %50 = dma.hbm_to_vmem [thread:$0]  %s5, 64, %s48, [#allocation6]
    $region25: #{tpu_custom_call.1} parent=1 // pred_fallthru
      _
    // Predicated region
    $region26: #{tpu_custom_call.1} parent=1 // pred_check
      _
    $region27: #{tpu_custom_call.1} parent=1 // pred_check_branch
      %52 = sbr.rel (0) target = $region29
    $region28: #{tpu_custom_call.1} parent=1 // pred_region
      %s54 = ssub.s32 16, 16
      %55 = vsyncadd [#allocation6], %s54
      %s57 = sshll.u32 [#allocation7], 4
      %s58 = int_to_ptr.vmem [resolvable:$true] %s57
      %60 = dma.hbm_to_vmem [thread:$0]  %s6, 16, %s58, [#allocation6]
    $region29: #{tpu_custom_call.1} parent=1 // pred_fallthru
      _
    // Predicated region
    $region30: #{tpu_custom_call.1} parent=1 // pred_check
      _
    $region31: #{tpu_custom_call.1} parent=1 // pred_check_branch
      %62 = sbr.rel (0) target = $region33
    $region32: #{tpu_custom_call.1} parent=1 // pred_region
      _
    $region33: #{tpu_custom_call.1} parent=1 // pred_fallthru
      _
    // Predicated region
    $region34: #{tpu_custom_call.1} parent=1 // pred_check
      _
    $region35: #{tpu_custom_call.1} parent=1 // pred_check_branch
      %64 = sbr.rel (0) target = $region37
    $region36: #{tpu_custom_call.1} parent=1 // pred_region
      %s66 = ssub.s32 16, 16
      %67 = vsyncadd [#allocation9], %s66
      %s69 = sshll.u32 [#allocation8], 4
      %s70 = int_to_ptr.vmem [resolvable:$true] %s69
      %72 = dma.hbm_to_vmem [thread:$0]  %s8, 16, %s70, [#allocation9]
    $region37: #{tpu_custom_call.1} parent=1 // pred_fallthru
      _
    // Predicated region
    $region38: #{tpu_custom_call.1} parent=1 // pred_check
      _
    $region39: #{tpu_custom_call.1} parent=1 // pred_check_branch
      %74 = sbr.rel (0) target = $region41
    $region40: #{tpu_custom_call.1} parent=1 // pred_region
      _
    $region41: #{tpu_custom_call.1} parent=1 // pred_fallthru
      _
    // Predicated region
    $region42: #{tpu_custom_call.1} parent=1 // pred_check
      _
    $region43: #{tpu_custom_call.1} parent=1 // pred_check_branch
      %76 = sbr.rel (0) target = $region45
    $region44: #{tpu_custom_call.1} parent=1 // pred_region
      _
    $region45: #{tpu_custom_call.1} parent=1 // pred_fallthru
      _
    // Predicated region
    $region46: #{tpu_custom_call.1} parent=1 // pred_check
      _
    $region47: #{tpu_custom_call.1} parent=1 // pred_check_branch
      %78 = sbr.rel (0) target = $region49
    $region48: #{tpu_custom_call.1} parent=1 // pred_region
      _
    $region49: #{tpu_custom_call.1} parent=1 // pred_fallthru
      _
    // Predicated region
    $region50: #{tpu_custom_call.1} parent=1 // pred_check
      _
    $region51: #{tpu_custom_call.1} parent=1 // pred_check_branch
      %80 = sbr.rel (0) target = $region53
    $region52: #{tpu_custom_call.1} parent=1 // pred_region
      _
    $region53: #{tpu_custom_call.1} parent=1 // pred_fallthru
      _
    // Predicated region
    $region54: #{tpu_custom_call.1} parent=1 // pred_check
      _
    $region55: #{tpu_custom_call.1} parent=1 // pred_check_branch
      %82 = sbr.rel (0) target = $region57
    $region56: #{tpu_custom_call.1} parent=1 // pred_region
      %83 = dma.done [#allocation4], 256
    $region57: #{tpu_custom_call.1} parent=1 // pred_fallthru
      _
    // Predicated region
    $region58: #{tpu_custom_call.1} parent=1 // pred_check
      _
    $region59: #{tpu_custom_call.1} parent=1 // pred_check_branch
      %85 = sbr.rel (0) target = $region61
    $region60: #{tpu_custom_call.1} parent=1 // pred_region
      %86 = dma.done [#allocation6], 64
    $region61: #{tpu_custom_call.1} parent=1 // pred_fallthru
      _
    // Predicated region
    $region62: #{tpu_custom_call.1} parent=1 // pred_check
      _
    $region63: #{tpu_custom_call.1} parent=1 // pred_check_branch
      %88 = sbr.rel (0) target = $region65
    $region64: #{tpu_custom_call.1} parent=1 // pred_region
      %89 = dma.done [#allocation6], 16
    $region65: #{tpu_custom_call.1} parent=1 // pred_fallthru
      _
    // Predicated region
    $region66: #{tpu_custom_call.1} parent=1 // pred_check
      _
    $region67: #{tpu_custom_call.1} parent=1 // pred_check_branch
      %91 = sbr.rel (0) target = $region69
    $region68: #{tpu_custom_call.1} parent=1 // pred_region
      %92 = dma.done [#allocation9], 16
    $region69: #{tpu_custom_call.1} parent=1 // pred_fallthru
      _
    %v93 = vld [vmem:[%s0] sm:$0xff]
    %v94 = vld [vmem:[%s0 + $0x8] sm:$0xff]
    %v95 = vld [vmem:[%s0 + $0x10] sm:$0xff]
    %v96 = vld [vmem:[%s0 + $0x18] sm:$0xff]
    %97 = vst [vmem:[#allocation2 + $0x7] sm:$0x1] 0.0
    %98 = vst [vmem:[#allocation2 + $0x27] sm:$0x1] 0.0
    %99 = vst [vmem:[#allocation2 + $0x18] sm:$0x1] 0.0
    %100 = vst [vmem:[#allocation2 + $0x38] sm:$0x1] 0.0
    %vm101 = vcmask 31744
    %102 = vst.msk [vmem:[#allocation2 + $0x8] sm:$0xff] %vm101, %v93
    %103 = vst.msk [vmem:[#allocation2 + $0x10] sm:$0xff] %vm101, %v94
    %104 = vst.msk [vmem:[#allocation2 + $0x28] sm:$0xff] %vm101, %v95
    %105 = vst.msk [vmem:[#allocation2 + $0x30] sm:$0xff] %vm101, %v96
    %v106 = vld [vmem:[#allocation2 + $0x7] sm:$0xff]
    %v107 = vld [vmem:[#allocation2 + $0xf] sm:$0xff]
    %v108 = vld [vmem:[#allocation2 + $0x27] sm:$0xff]
    %v109 = vld [vmem:[#allocation2 + $0x2f] sm:$0xff]
    %v110 = vld [vmem:[#allocation2 + $0x8] sm:$0xff]
    %v111 = vld [vmem:[#allocation2 + $0x10] sm:$0xff]
    %v112 = vld [vmem:[#allocation2 + $0x28] sm:$0xff]
    %v113 = vld [vmem:[#allocation2 + $0x30] sm:$0xff]
    %v114 = vld [vmem:[#allocation2 + $0x9] sm:$0xff]
    %v115 = vld [vmem:[#allocation2 + $0x11] sm:$0xff]
    %v116 = vld [vmem:[#allocation2 + $0x29] sm:$0xff]
    %v117 = vld [vmem:[#allocation2 + $0x31] sm:$0xff]
    %122 = vrot.lane.b32.xlu0 %v110, 4
    %v123 = vpop.permute.xlu0 %122
    %124 = vrot.lane.b32.xlu0 %v111, 4
    %v125 = vpop.permute.xlu0 %124
    %126 = vrot.lane.b32.xlu0 %v112, 4
    %v127 = vpop.permute.xlu0 %126
    %128 = vrot.lane.b32.xlu0 %v113, 4
    %v129 = vpop.permute.xlu0 %128
    %138 = vrot.lane.b32.xlu0 %v114, 8
    %v139 = vpop.permute.xlu0 %138
    %140 = vrot.lane.b32.xlu0 %v115, 8
    %v141 = vpop.permute.xlu0 %140
    %142 = vrot.lane.b32.xlu0 %v116, 8
    %v143 = vpop.permute.xlu0 %142
    %144 = vrot.lane.b32.xlu0 %v117, 8
    %v145 = vpop.permute.xlu0 %144
    %v150 = vsel %vm101, %v106, %v123
    %v151 = vsel %vm101, %v107, %v125
    %v152 = vsel %vm101, %v108, %v127
    %v153 = vsel %vm101, %v109, %v129
    %vm154 = vcmask 64512
    %v155 = vsel %vm154, %v150, %v139
    %v156 = vsel %vm154, %v151, %v141
    %v157 = vsel %vm154, %v152, %v143
    %v158 = vsel %vm154, %v153, %v145
    %v159 = vld [vmem:[#allocation3] sm:$0xff]
    %v160 = vld [vmem:[#allocation3 + $0x8] sm:$0xf]
    %v161 = vld [vmem:[%s2] sm:$0x1]
    %v163 = vlaneseq
    %v164 = vshrl.u32 %v163, 7
    %v165 = vsub.s32 0, %v164
    %v166 = vrot.slane %v161, %v165
    %vm168 = vcmask 97280
    %v170 = vsel %vm168, %v155, 0
    %v173 = vsel %vm168, %v156, 0
    %v176 = vsel %vm168, %v157, 0
    %v179 = vsel %vm168, %v158, 0
    %vm181 = vcmask 1043456
    %v183 = vsel %vm181, %v160, 0
    %185 = vmatprep.subr.mxu0 0.0
    %186 = vmatpush1.msra.mxu0 %v159
    %187 = vmatprep.subr.mxu0 0.0
    %188 = vmatpush1.msra.mxu0 %v183
    %189 = vmatprep.subr.mxu0 0.0
    %190 = vmatpush1.msra.mxu0 0.0
    %191 = vmatprep.subr.mxu0 0.0
    %192 = vmatpush1.msra.mxu0 0.0
    %193 = vmatprep.subr.mxu0 0.0
    %194 = vmatpush1.msra.mxu0 0.0
    %195 = vmatprep.subr.mxu0 0.0
    %196 = vmatpush1.msra.mxu0 0.0
    %197 = vmatprep.subr.mxu0 0.0
    %198 = vmatpush1.msra.mxu0 0.0
    %199 = vmatprep.subr.mxu0 0.0
    %200 = vmatpush1.msra.mxu0 0.0
    %201 = vmatprep.subr.mxu0 0.0
    %202 = vmatpush1.msra.mxu0 0.0
    %203 = vmatprep.subr.mxu0 0.0
    %204 = vmatpush1.msra.mxu0 0.0
    %205 = vmatprep.subr.mxu0 0.0
    %206 = vmatpush1.msra.mxu0 0.0
    %207 = vmatprep.subr.mxu0 0.0
    %208 = vmatpush1.msra.mxu0 0.0
    %209 = vmatprep.subr.mxu0 0.0
    %210 = vmatpush1.msra.mxu0 0.0
    %211 = vmatprep.subr.mxu0 0.0
    %212 = vmatpush1.msra.mxu0 0.0
    %213 = vmatprep.subr.mxu0 0.0
    %214 = vmatpush1.msra.mxu0 0.0
    %215 = vmatprep.subr.mxu0 0.0
    %216 = vmatpush1.msra.mxu0 0.0
    %217 = vmatprep.subr.mxu0 0.0
    %218 = vmatpush1.msra.mxu0 0.0
    %219 = vmatprep.subr.mxu0 0.0
    %220 = vmatpush1.msra.mxu0 0.0
    %221 = vmatprep.subr.mxu0 0.0
    %222 = vmatpush1.msra.mxu0 0.0
    %223 = vmatprep.subr.mxu0 0.0
    %224 = vmatpush1.msra.mxu0 0.0
    %225 = vmatprep.subr.mxu0 0.0
    %226 = vmatpush1.msra.mxu0 0.0
    %227 = vmatprep.subr.mxu0 0.0
    %228 = vmatpush1.msra.mxu0 0.0
    %229 = vmatprep.subr.mxu0 0.0
    %230 = vmatpush1.msra.mxu0 0.0
    %231 = vmatprep.subr.mxu0 0.0
    %232 = vmatpush1.msra.mxu0 0.0
    %233 = vmatprep.subr.mxu0 0.0
    %234 = vmatpush1.msra.mxu0 0.0
    %235 = vmatprep.subr.mxu0 0.0
    %236 = vmatpush1.msra.mxu0 0.0
    %237 = vmatprep.subr.mxu0 0.0
    %238 = vmatpush1.msra.mxu0 0.0
    %239 = vmatprep.subr.mxu0 0.0
    %240 = vmatpush1.msra.mxu0 0.0
    %241 = vmatprep.subr.mxu0 0.0
    %242 = vmatpush1.msra.mxu0 0.0
    %243 = vmatprep.subr.mxu0 0.0
    %244 = vmatpush1.msra.mxu0 0.0
    %245 = vmatprep.subr.mxu0 0.0
    %246 = vmatpush1.msra.mxu0 0.0
    %247 = vmatprep.subr.mxu0 0.0
    %248 = vmatpush1.msra.mxu0 0.0
    %249 = vmatprep.mubr.f32.mxu0 0.0
    %250 = vmatmul.mubr.f32.gmra.mrb[0].mxu0 %v170
    %v251 = vpop.f32.mrb[0].mxu0
    %v252 = vadd.f32 %v166, %v251
    %v253 = vpop.f32.mrb[0].mxu0
    %254 = vmatprep.mubr.f32.mxu0 0.0
    %255 = vmatmul.mubr.f32.gmra.mrb[0].mxu0 %v173
    %v256 = vpop.f32.mrb[0].mxu0
    %v257 = vadd.f32 %v166, %v256
    %v258 = vpop.f32.mrb[0].mxu0
    %259 = vmatprep.mubr.f32.mxu0 0.0
    %260 = vmatmul.mubr.f32.gmra.mrb[0].mxu0 %v176
    %v261 = vpop.f32.mrb[0].mxu0
    %v262 = vadd.f32 %v166, %v261
    %v263 = vpop.f32.mrb[0].mxu0
    %264 = vmatprep.mubr.f32.mxu0 0.0
    %265 = vmatmul.mubr.f32.gmra.mrb[0].mxu0 %v179
    %v266 = vpop.f32.mrb[0].mxu0
    %v267 = vadd.f32 %v166, %v266
    %v268 = vpop.f32.mrb[0].mxu0
    %269 = vdwg.mxu0
    %v270 = vmax.f32 %v252, 0.0
    %v271 = vmax.f32 %v257, 0.0
    %v272 = vmax.f32 %v262, 0.0
    %v273 = vmax.f32 %v267, 0.0
    %v274 = vld [vmem:[#allocation5] sm:$0xf]
    %v275 = vld [vmem:[#allocation7] sm:$0x1]
    %v277 = vlaneseq
    %v278 = vshrl.u32 %v277, 7
    %v279 = vsub.s32 0, %v278
    %v280 = vrot.slane %v275, %v279
    %v283 = vsel %vm101, %v93, 0
    %v286 = vsel %vm101, %v94, 0
    %v289 = vsel %vm101, %v95, 0
    %v292 = vsel %vm101, %v96, 0
    %v295 = vsel %vm181, %v274, 0
    %297 = vmatprep.subr.mxu0 0.0
    %298 = vmatpush1.msra.mxu0 %v295
    %299 = vmatprep.subr.mxu0 0.0
    %300 = vmatpush1.msra.mxu0 0.0
    %301 = vmatprep.subr.mxu0 0.0
    %302 = vmatpush1.msra.mxu0 0.0
    %303 = vmatprep.subr.mxu0 0.0
    %304 = vmatpush1.msra.mxu0 0.0
    %305 = vmatprep.subr.mxu0 0.0
    %306 = vmatpush1.msra.mxu0 0.0
    %307 = vmatprep.subr.mxu0 0.0
    %308 = vmatpush1.msra.mxu0 0.0
    %309 = vmatprep.subr.mxu0 0.0
    %310 = vmatpush1.msra.mxu0 0.0
    %311 = vmatprep.subr.mxu0 0.0
    %312 = vmatpush1.msra.mxu0 0.0
    %313 = vmatprep.subr.mxu0 0.0
    %314 = vmatpush1.msra.mxu0 0.0
    %315 = vmatprep.subr.mxu0 0.0
    %316 = vmatpush1.msra.mxu0 0.0
    %317 = vmatprep.subr.mxu0 0.0
    %318 = vmatpush1.msra.mxu0 0.0
    %319 = vmatprep.subr.mxu0 0.0
    %320 = vmatpush1.msra.mxu0 0.0
    %321 = vmatprep.subr.mxu0 0.0
    %322 = vmatpush1.msra.mxu0 0.0
    %323 = vmatprep.subr.mxu0 0.0
    %324 = vmatpush1.msra.mxu0 0.0
    %325 = vmatprep.subr.mxu0 0.0
    %326 = vmatpush1.msra.mxu0 0.0
    %327 = vmatprep.subr.mxu0 0.0
    %328 = vmatpush1.msra.mxu0 0.0
    %329 = vmatprep.subr.mxu0 0.0
    %330 = vmatpush1.msra.mxu0 0.0
    %331 = vmatprep.subr.mxu0 0.0
    %332 = vmatpush1.msra.mxu0 0.0
    %333 = vmatprep.subr.mxu0 0.0
    %334 = vmatpush1.msra.mxu0 0.0
    %335 = vmatprep.subr.mxu0 0.0
    %336 = vmatpush1.msra.mxu0 0.0
    %337 = vmatprep.subr.mxu0 0.0
    %338 = vmatpush1.msra.mxu0 0.0
    %339 = vmatprep.subr.mxu0 0.0
    %340 = vmatpush1.msra.mxu0 0.0
    %341 = vmatprep.subr.mxu0 0.0
    %342 = vmatpush1.msra.mxu0 0.0
    %343 = vmatprep.subr.mxu0 0.0
    %344 = vmatpush1.msra.mxu0 0.0
    %345 = vmatprep.subr.mxu0 0.0
    %346 = vmatpush1.msra.mxu0 0.0
    %347 = vmatprep.subr.mxu0 0.0
    %348 = vmatpush1.msra.mxu0 0.0
    %349 = vmatprep.subr.mxu0 0.0
    %350 = vmatpush1.msra.mxu0 0.0
    %351 = vmatprep.subr.mxu0 0.0
    %352 = vmatpush1.msra.mxu0 0.0
    %353 = vmatprep.subr.mxu0 0.0
    %354 = vmatpush1.msra.mxu0 0.0
    %355 = vmatprep.subr.mxu0 0.0
    %356 = vmatpush1.msra.mxu0 0.0
    %357 = vmatprep.subr.mxu0 0.0
    %358 = vmatpush1.msra.mxu0 0.0
    %359 = vmatprep.subr.mxu0 0.0
    %360 = vmatpush1.msra.mxu0 0.0
    %361 = vmatprep.mubr.f32.mxu0 0.0
    %362 = vmatmul.mubr.f32.gmra.mrb[0].mxu0 %v283
    %v363 = vpop.f32.mrb[0].mxu0
    %v364 = vadd.f32 %v280, %v363
    %v365 = vpop.f32.mrb[0].mxu0
    %366 = vmatprep.mubr.f32.mxu0 0.0
    %367 = vmatmul.mubr.f32.gmra.mrb[0].mxu0 %v286
    %v368 = vpop.f32.mrb[0].mxu0
    %v369 = vadd.f32 %v280, %v368
    %v370 = vpop.f32.mrb[0].mxu0
    %371 = vmatprep.mubr.f32.mxu0 0.0
    %372 = vmatmul.mubr.f32.gmra.mrb[0].mxu0 %v289
    %v373 = vpop.f32.mrb[0].mxu0
    %v374 = vadd.f32 %v280, %v373
    %v375 = vpop.f32.mrb[0].mxu0
    %376 = vmatprep.mubr.f32.mxu0 0.0
    %377 = vmatmul.mubr.f32.gmra.mrb[0].mxu0 %v292
    %v378 = vpop.f32.mrb[0].mxu0
    %v379 = vadd.f32 %v280, %v378
    %v380 = vpop.f32.mrb[0].mxu0
    %381 = vdwg.mxu0
    %382 = vst [vmem:[#allocation2 + $0x8] sm:$0xff] %v270
    %383 = vst [vmem:[#allocation2 + $0x10] sm:$0xff] %v271
    %384 = vst [vmem:[#allocation2 + $0x28] sm:$0xff] %v272
    %385 = vst [vmem:[#allocation2 + $0x30] sm:$0xff] %v273
    %v386 = vld [vmem:[#allocation2 + $0x7] sm:$0xff]
    %v387 = vld [vmem:[#allocation2 + $0xf] sm:$0xff]
    %v388 = vld [vmem:[#allocation2 + $0x27] sm:$0xff]
    %v389 = vld [vmem:[#allocation2 + $0x2f] sm:$0xff]
    %v390 = vld [vmem:[#allocation2 + $0x8] sm:$0xff]
    %v391 = vld [vmem:[#allocation2 + $0x10] sm:$0xff]
    %v392 = vld [vmem:[#allocation2 + $0x28] sm:$0xff]
    %v393 = vld [vmem:[#allocation2 + $0x30] sm:$0xff]
    %v394 = vld [vmem:[#allocation2 + $0x9] sm:$0xff]
    %v395 = vld [vmem:[#allocation2 + $0x11] sm:$0xff]
    %v396 = vld [vmem:[#allocation2 + $0x29] sm:$0xff]
    %v397 = vld [vmem:[#allocation2 + $0x31] sm:$0xff]
    %402 = vrot.lane.b32.xlu0 %v390, 8
    %v403 = vpop.permute.xlu0 %402
    %404 = vrot.lane.b32.xlu0 %v391, 8
    %v405 = vpop.permute.xlu0 %404
    %406 = vrot.lane.b32.xlu0 %v392, 8
    %v407 = vpop.permute.xlu0 %406
    %408 = vrot.lane.b32.xlu0 %v393, 8
    %v409 = vpop.permute.xlu0 %408
    %418 = vrot.lane.b32.xlu0 %v394, 16
    %v419 = vpop.permute.xlu0 %418
    %420 = vrot.lane.b32.xlu0 %v395, 16
    %v421 = vpop.permute.xlu0 %420
    %422 = vrot.lane.b32.xlu0 %v396, 16
    %v423 = vpop.permute.xlu0 %422
    %424 = vrot.lane.b32.xlu0 %v397, 16
    %v425 = vpop.permute.xlu0 %424
    %v430 = vsel %vm154, %v386, %v403
    %v431 = vsel %vm154, %v387, %v405
    %v432 = vsel %vm154, %v388, %v407
    %v433 = vsel %vm154, %v389, %v409
    %vm434 = vcmask 130048
    %v435 = vsel %vm434, %v430, %v419
    %v436 = vsel %vm434, %v431, %v421
    %v437 = vsel %vm434, %v432, %v423
    %v438 = vsel %vm434, %v433, %v425
    %v439 = vld [vmem:[%s3] sm:$0xff]
    %v440 = vld [vmem:[%s3 + $0x8] sm:$0xff]
    %v441 = vld [vmem:[%s3 + $0x10] sm:$0xff]
    %v442 = vld [vmem:[%s4] sm:$0x1]
    %v444 = vlaneseq
    %v445 = vshrl.u32 %v444, 7
    %v446 = vsub.s32 0, %v445
    %v447 = vrot.slane %v442, %v446
    %vm449 = vcmask 195584
    %v451 = vsel %vm449, %v435, 0
    %v454 = vsel %vm449, %v436, 0
    %v457 = vsel %vm449, %v437, 0
    %v460 = vsel %vm449, %v438, 0
    %462 = vmatprep.subr.mxu0 0.0
    %463 = vmatpush1.msra.mxu0 %v439
    %464 = vmatprep.subr.mxu0 0.0
    %465 = vmatpush1.msra.mxu0 %v440
    %466 = vmatprep.subr.mxu0 0.0
    %467 = vmatpush1.msra.mxu0 %v441
    %468 = vmatprep.subr.mxu0 0.0
    %469 = vmatpush1.msra.mxu0 0.0
    %470 = vmatprep.subr.mxu0 0.0
    %471 = vmatpush1.msra.mxu0 0.0
    %472 = vmatprep.subr.mxu0 0.0
    %473 = vmatpush1.msra.mxu0 0.0
    %474 = vmatprep.subr.mxu0 0.0
    %475 = vmatpush1.msra.mxu0 0.0
    %476 = vmatprep.subr.mxu0 0.0
    %477 = vmatpush1.msra.mxu0 0.0
    %478 = vmatprep.subr.mxu0 0.0
    %479 = vmatpush1.msra.mxu0 0.0
    %480 = vmatprep.subr.mxu0 0.0
    %481 = vmatpush1.msra.mxu0 0.0
    %482 = vmatprep.subr.mxu0 0.0
    %483 = vmatpush1.msra.mxu0 0.0
    %484 = vmatprep.subr.mxu0 0.0
    %485 = vmatpush1.msra.mxu0 0.0
    %486 = vmatprep.subr.mxu0 0.0
    %487 = vmatpush1.msra.mxu0 0.0
    %488 = vmatprep.subr.mxu0 0.0
    %489 = vmatpush1.msra.mxu0 0.0
    %490 = vmatprep.subr.mxu0 0.0
    %491 = vmatpush1.msra.mxu0 0.0
    %492 = vmatprep.subr.mxu0 0.0
    %493 = vmatpush1.msra.mxu0 0.0
    %494 = vmatprep.subr.mxu0 0.0
    %495 = vmatpush1.msra.mxu0 0.0
    %496 = vmatprep.subr.mxu0 0.0
    %497 = vmatpush1.msra.mxu0 0.0
    %498 = vmatprep.subr.mxu0 0.0
    %499 = vmatpush1.msra.mxu0 0.0
    %500 = vmatprep.subr.mxu0 0.0
    %501 = vmatpush1.msra.mxu0 0.0
    %502 = vmatprep.subr.mxu0 0.0
    %503 = vmatpush1.msra.mxu0 0.0
    %504 = vmatprep.subr.mxu0 0.0
    %505 = vmatpush1.msra.mxu0 0.0
    %506 = vmatprep.subr.mxu0 0.0
    %507 = vmatpush1.msra.mxu0 0.0
    %508 = vmatprep.subr.mxu0 0.0
    %509 = vmatpush1.msra.mxu0 0.0
    %510 = vmatprep.subr.mxu0 0.0
    %511 = vmatpush1.msra.mxu0 0.0
    %512 = vmatprep.subr.mxu0 0.0
    %513 = vmatpush1.msra.mxu0 0.0
    %514 = vmatprep.subr.mxu0 0.0
    %515 = vmatpush1.msra.mxu0 0.0
    %516 = vmatprep.subr.mxu0 0.0
    %517 = vmatpush1.msra.mxu0 0.0
    %518 = vmatprep.subr.mxu0 0.0
    %519 = vmatpush1.msra.mxu0 0.0
    %520 = vmatprep.subr.mxu0 0.0
    %521 = vmatpush1.msra.mxu0 0.0
    %522 = vmatprep.subr.mxu0 0.0
    %523 = vmatpush1.msra.mxu0 0.0
    %524 = vmatprep.subr.mxu0 0.0
    %525 = vmatpush1.msra.mxu0 0.0
    %526 = vmatprep.mubr.f32.mxu0 0.0
    %527 = vmatmul.mubr.f32.gmra.mrb[0].mxu0 %v451
    %v528 = vpop.f32.mrb[0].mxu0
    %v529 = vadd.f32 %v447, %v528
    %v530 = vpop.f32.mrb[0].mxu0
    %531 = vmatprep.mubr.f32.mxu0 0.0
    %532 = vmatmul.mubr.f32.gmra.mrb[0].mxu0 %v454
    %v533 = vpop.f32.mrb[0].mxu0
    %v534 = vadd.f32 %v447, %v533
    %v535 = vpop.f32.mrb[0].mxu0
    %536 = vmatprep.mubr.f32.mxu0 0.0
    %537 = vmatmul.mubr.f32.gmra.mrb[0].mxu0 %v457
    %v538 = vpop.f32.mrb[0].mxu0
    %v539 = vadd.f32 %v447, %v538
    %v540 = vpop.f32.mrb[0].mxu0
    %541 = vmatprep.mubr.f32.mxu0 0.0
    %542 = vmatmul.mubr.f32.gmra.mrb[0].mxu0 %v460
    %v543 = vpop.f32.mrb[0].mxu0
    %v544 = vadd.f32 %v447, %v543
    %v545 = vpop.f32.mrb[0].mxu0
    %546 = vdwg.mxu0
    %v547 = vmax.f32 %v529, 0.0
    %v548 = vmax.f32 %v534, 0.0
    %v549 = vmax.f32 %v539, 0.0
    %v550 = vmax.f32 %v544, 0.0
    %v551 = vadd.f32 %v547, %v364
    %v552 = vadd.f32 %v548, %v369
    %v553 = vadd.f32 %v549, %v374
    %v554 = vadd.f32 %v550, %v379
    %555 = vst [vmem:[#allocation2 + $0x6] sm:$0x3] 0.0
    %556 = vst [vmem:[#allocation2 + $0x26] sm:$0x3] 0.0
    %557 = vst [vmem:[#allocation2 + $0x18] sm:$0x3] 0.0
    %558 = vst [vmem:[#allocation2 + $0x38] sm:$0x3] 0.0
    %559 = vst [vmem:[#allocation2 + $0x8] sm:$0xff] %v551
    %560 = vst [vmem:[#allocation2 + $0x10] sm:$0xff] %v552
    %561 = vst [vmem:[#allocation2 + $0x28] sm:$0xff] %v553
    %562 = vst [vmem:[#allocation2 + $0x30] sm:$0xff] %v554
    %v563 = vld [vmem:[#allocation2 + $0x6] sm:$0xff]
    %v564 = vld [vmem:[#allocation2 + $0xe] sm:$0xff]
    %v565 = vld [vmem:[#allocation2 + $0x26] sm:$0xff]
    %v566 = vld [vmem:[#allocation2 + $0x2e] sm:$0xff]
    %v567 = vld [vmem:[#allocation2 + $0x8] sm:$0xff]
    %v568 = vld [vmem:[#allocation2 + $0x10] sm:$0xff]
    %v569 = vld [vmem:[#allocation2 + $0x28] sm:$0xff]
    %v570 = vld [vmem:[#allocation2 + $0x30] sm:$0xff]
    %v571 = vld [vmem:[#allocation2 + $0xa] sm:$0xff]
    %v572 = vld [vmem:[#allocation2 + $0x12] sm:$0xff]
    %v573 = vld [vmem:[#allocation2 + $0x2a] sm:$0xff]
    %v574 = vld [vmem:[#allocation2 + $0x32] sm:$0xff]
    %579 = vrot.lane.b32.xlu0 %v567, 8
    %v580 = vpop.permute.xlu0 %579
    %581 = vrot.lane.b32.xlu0 %v568, 8
    %v582 = vpop.permute.xlu0 %581
    %583 = vrot.lane.b32.xlu0 %v569, 8
    %v584 = vpop.permute.xlu0 %583
    %585 = vrot.lane.b32.xlu0 %v570, 8
    %v586 = vpop.permute.xlu0 %585
    %595 = vrot.lane.b32.xlu0 %v571, 16
    %v596 = vpop.permute.xlu0 %595
    %597 = vrot.lane.b32.xlu0 %v572, 16
    %v598 = vpop.permute.xlu0 %597
    %599 = vrot.lane.b32.xlu0 %v573, 16
    %v600 = vpop.permute.xlu0 %599
    %601 = vrot.lane.b32.xlu0 %v574, 16
    %v602 = vpop.permute.xlu0 %601
    %v607 = vsel %vm154, %v563, %v580
    %v608 = vsel %vm154, %v564, %v582
    %v609 = vsel %vm154, %v565, %v584
    %v610 = vsel %vm154, %v566, %v586
    %v611 = vsel %vm434, %v607, %v596
    %v612 = vsel %vm434, %v608, %v598
    %v613 = vsel %vm434, %v609, %v600
    %v614 = vsel %vm434, %v610, %v602
    %v615 = vld [vmem:[%s7] sm:$0xff]
    %v616 = vld [vmem:[%s7 + $0x8] sm:$0xff]
    %v617 = vld [vmem:[%s7 + $0x10] sm:$0xff]
    %v618 = vld [vmem:[#allocation8] sm:$0x1]
    %v620 = vlaneseq
    %v621 = vshrl.u32 %v620, 7
    %v622 = vsub.s32 0, %v621
    %v623 = vrot.slane %v618, %v622
    %v626 = vsel %vm449, %v611, 0
    %v629 = vsel %vm449, %v612, 0
    %v632 = vsel %vm449, %v613, 0
    %v635 = vsel %vm449, %v614, 0
    %637 = vmatprep.subr.mxu0 0.0
    %638 = vmatpush1.msra.mxu0 %v615
    %639 = vmatprep.subr.mxu0 0.0
    %640 = vmatpush1.msra.mxu0 %v616
    %641 = vmatprep.subr.mxu0 0.0
    %642 = vmatpush1.msra.mxu0 %v617
    %643 = vmatprep.subr.mxu0 0.0
    %644 = vmatpush1.msra.mxu0 0.0
    %645 = vmatprep.subr.mxu0 0.0
    %646 = vmatpush1.msra.mxu0 0.0
    %647 = vmatprep.subr.mxu0 0.0
    %648 = vmatpush1.msra.mxu0 0.0
    %649 = vmatprep.subr.mxu0 0.0
    %650 = vmatpush1.msra.mxu0 0.0
    %651 = vmatprep.subr.mxu0 0.0
    %652 = vmatpush1.msra.mxu0 0.0
    %653 = vmatprep.subr.mxu0 0.0
    %654 = vmatpush1.msra.mxu0 0.0
    %655 = vmatprep.subr.mxu0 0.0
    %656 = vmatpush1.msra.mxu0 0.0
    %657 = vmatprep.subr.mxu0 0.0
    %658 = vmatpush1.msra.mxu0 0.0
    %659 = vmatprep.subr.mxu0 0.0
    %660 = vmatpush1.msra.mxu0 0.0
    %661 = vmatprep.subr.mxu0 0.0
    %662 = vmatpush1.msra.mxu0 0.0
    %663 = vmatprep.subr.mxu0 0.0
    %664 = vmatpush1.msra.mxu0 0.0
    %665 = vmatprep.subr.mxu0 0.0
    %666 = vmatpush1.msra.mxu0 0.0
    %667 = vmatprep.subr.mxu0 0.0
    %668 = vmatpush1.msra.mxu0 0.0
    %669 = vmatprep.subr.mxu0 0.0
    %670 = vmatpush1.msra.mxu0 0.0
    %671 = vmatprep.subr.mxu0 0.0
    %672 = vmatpush1.msra.mxu0 0.0
    %673 = vmatprep.subr.mxu0 0.0
    %674 = vmatpush1.msra.mxu0 0.0
    %675 = vmatprep.subr.mxu0 0.0
    %676 = vmatpush1.msra.mxu0 0.0
    %677 = vmatprep.subr.mxu0 0.0
    %678 = vmatpush1.msra.mxu0 0.0
    %679 = vmatprep.subr.mxu0 0.0
    %680 = vmatpush1.msra.mxu0 0.0
    %681 = vmatprep.subr.mxu0 0.0
    %682 = vmatpush1.msra.mxu0 0.0
    %683 = vmatprep.subr.mxu0 0.0
    %684 = vmatpush1.msra.mxu0 0.0
    %685 = vmatprep.subr.mxu0 0.0
    %686 = vmatpush1.msra.mxu0 0.0
    %687 = vmatprep.subr.mxu0 0.0
    %688 = vmatpush1.msra.mxu0 0.0
    %689 = vmatprep.subr.mxu0 0.0
    %690 = vmatpush1.msra.mxu0 0.0
    %691 = vmatprep.subr.mxu0 0.0
    %692 = vmatpush1.msra.mxu0 0.0
    %693 = vmatprep.subr.mxu0 0.0
    %694 = vmatpush1.msra.mxu0 0.0
    %695 = vmatprep.subr.mxu0 0.0
    %696 = vmatpush1.msra.mxu0 0.0
    %697 = vmatprep.subr.mxu0 0.0
    %698 = vmatpush1.msra.mxu0 0.0
    %699 = vmatprep.subr.mxu0 0.0
    %700 = vmatpush1.msra.mxu0 0.0
    %701 = vmatprep.mubr.f32.mxu0 0.0
    %702 = vmatmul.mubr.f32.gmra.mrb[0].mxu0 %v626
    %v703 = vpop.f32.mrb[0].mxu0
    %v704 = vadd.f32 %v623, %v703
    %v705 = vpop.f32.mrb[0].mxu0
    %706 = vmatprep.mubr.f32.mxu0 0.0
    %707 = vmatmul.mubr.f32.gmra.mrb[0].mxu0 %v629
    %v708 = vpop.f32.mrb[0].mxu0
    %v709 = vadd.f32 %v623, %v708
    %v710 = vpop.f32.mrb[0].mxu0
    %711 = vmatprep.mubr.f32.mxu0 0.0
    %712 = vmatmul.mubr.f32.gmra.mrb[0].mxu0 %v632
    %v713 = vpop.f32.mrb[0].mxu0
    %v714 = vadd.f32 %v623, %v713
    %v715 = vpop.f32.mrb[0].mxu0
    %716 = vmatprep.mubr.f32.mxu0 0.0
    %717 = vmatmul.mubr.f32.gmra.mrb[0].mxu0 %v635
    %v718 = vpop.f32.mrb[0].mxu0
    %v719 = vadd.f32 %v623, %v718
    %v720 = vpop.f32.mrb[0].mxu0
    %721 = vdwg.mxu0
    %v722 = vmax.f32 %v704, 0.0
    %v723 = vmax.f32 %v709, 0.0
    %v724 = vmax.f32 %v714, 0.0
    %v725 = vmax.f32 %v719, 0.0
    %v726 = vld [vmem:[%s11] sm:$0xff]
    %v727 = vld [vmem:[%s12] sm:$0x1]
    %v729 = vlaneseq
    %v730 = vshrl.u32 %v729, 7
    %v731 = vsub.s32 0, %v730
    %v732 = vrot.slane %v727, %v731
    %v735 = vsel %vm154, %v551, 0
    %v738 = vsel %vm154, %v552, 0
    %v741 = vsel %vm154, %v553, 0
    %v744 = vsel %vm154, %v554, 0
    %746 = vmatprep.subr.mxu0 0.0
    %747 = vmatpush1.msra.mxu0 %v726
    %748 = vmatprep.subr.mxu0 0.0
    %749 = vmatpush1.msra.mxu0 0.0
    %750 = vmatprep.subr.mxu0 0.0
    %751 = vmatpush1.msra.mxu0 0.0
    %752 = vmatprep.subr.mxu0 0.0
    %753 = vmatpush1.msra.mxu0 0.0
    %754 = vmatprep.subr.mxu0 0.0
    %755 = vmatpush1.msra.mxu0 0.0
    %756 = vmatprep.subr.mxu0 0.0
    %757 = vmatpush1.msra.mxu0 0.0
    %758 = vmatprep.subr.mxu0 0.0
    %759 = vmatpush1.msra.mxu0 0.0
    %760 = vmatprep.subr.mxu0 0.0
    %761 = vmatpush1.msra.mxu0 0.0
    %762 = vmatprep.subr.mxu0 0.0
    %763 = vmatpush1.msra.mxu0 0.0
    %764 = vmatprep.subr.mxu0 0.0
    %765 = vmatpush1.msra.mxu0 0.0
    %766 = vmatprep.subr.mxu0 0.0
    %767 = vmatpush1.msra.mxu0 0.0
    %768 = vmatprep.subr.mxu0 0.0
    %769 = vmatpush1.msra.mxu0 0.0
    %770 = vmatprep.subr.mxu0 0.0
    %771 = vmatpush1.msra.mxu0 0.0
    %772 = vmatprep.subr.mxu0 0.0
    %773 = vmatpush1.msra.mxu0 0.0
    %774 = vmatprep.subr.mxu0 0.0
    %775 = vmatpush1.msra.mxu0 0.0
    %776 = vmatprep.subr.mxu0 0.0
    %777 = vmatpush1.msra.mxu0 0.0
    %778 = vmatprep.subr.mxu0 0.0
    %779 = vmatpush1.msra.mxu0 0.0
    %780 = vmatprep.subr.mxu0 0.0
    %781 = vmatpush1.msra.mxu0 0.0
    %782 = vmatprep.subr.mxu0 0.0
    %783 = vmatpush1.msra.mxu0 0.0
    %784 = vmatprep.subr.mxu0 0.0
    %785 = vmatpush1.msra.mxu0 0.0
    %786 = vmatprep.subr.mxu0 0.0
    %787 = vmatpush1.msra.mxu0 0.0
    %788 = vmatprep.subr.mxu0 0.0
    %789 = vmatpush1.msra.mxu0 0.0
    %790 = vmatprep.subr.mxu0 0.0
    %791 = vmatpush1.msra.mxu0 0.0
    %792 = vmatprep.subr.mxu0 0.0
    %793 = vmatpush1.msra.mxu0 0.0
    %794 = vmatprep.subr.mxu0 0.0
    %795 = vmatpush1.msra.mxu0 0.0
    %796 = vmatprep.subr.mxu0 0.0
    %797 = vmatpush1.msra.mxu0 0.0
    %798 = vmatprep.subr.mxu0 0.0
    %799 = vmatpush1.msra.mxu0 0.0
    %800 = vmatprep.subr.mxu0 0.0
    %801 = vmatpush1.msra.mxu0 0.0
    %802 = vmatprep.subr.mxu0 0.0
    %803 = vmatpush1.msra.mxu0 0.0
    %804 = vmatprep.subr.mxu0 0.0
    %805 = vmatpush1.msra.mxu0 0.0
    %806 = vmatprep.subr.mxu0 0.0
    %807 = vmatpush1.msra.mxu0 0.0
    %808 = vmatprep.subr.mxu0 0.0
    %809 = vmatpush1.msra.mxu0 0.0
    %810 = vmatprep.mubr.f32.mxu0 0.0
    %811 = vmatmul.mubr.f32.gmra.mrb[0].mxu0 %v735
    %v812 = vpop.f32.mrb[0].mxu0
    %v813 = vadd.f32 %v732, %v812
    %v814 = vpop.f32.mrb[0].mxu0
    %815 = vmatprep.mubr.f32.mxu0 0.0
    %816 = vmatmul.mubr.f32.gmra.mrb[0].mxu0 %v738
    %v817 = vpop.f32.mrb[0].mxu0
    %v818 = vadd.f32 %v732, %v817
    %v819 = vpop.f32.mrb[0].mxu0
    %820 = vmatprep.mubr.f32.mxu0 0.0
    %821 = vmatmul.mubr.f32.gmra.mrb[0].mxu0 %v741
    %v822 = vpop.f32.mrb[0].mxu0
    %v823 = vadd.f32 %v732, %v822
    %v824 = vpop.f32.mrb[0].mxu0
    %825 = vmatprep.mubr.f32.mxu0 0.0
    %826 = vmatmul.mubr.f32.gmra.mrb[0].mxu0 %v744
    %v827 = vpop.f32.mrb[0].mxu0
    %v828 = vadd.f32 %v732, %v827
    %v829 = vpop.f32.mrb[0].mxu0
    %830 = vdwg.mxu0
    %831 = vst [vmem:[#allocation2 + $0x8] sm:$0xff] %v722
    %832 = vst [vmem:[#allocation2 + $0x10] sm:$0xff] %v723
    %833 = vst [vmem:[#allocation2 + $0x28] sm:$0xff] %v724
    %834 = vst [vmem:[#allocation2 + $0x30] sm:$0xff] %v725
    %v835 = vld [vmem:[#allocation2 + $0x6] sm:$0xff]
    %v836 = vld [vmem:[#allocation2 + $0xe] sm:$0xff]
    %v837 = vld [vmem:[#allocation2 + $0x26] sm:$0xff]
    %v838 = vld [vmem:[#allocation2 + $0x2e] sm:$0xff]
    %v839 = vld [vmem:[#allocation2 + $0x8] sm:$0xff]
    %v840 = vld [vmem:[#allocation2 + $0x10] sm:$0xff]
    %v841 = vld [vmem:[#allocation2 + $0x28] sm:$0xff]
    %v842 = vld [vmem:[#allocation2 + $0x30] sm:$0xff]
    %v843 = vld [vmem:[#allocation2 + $0xa] sm:$0xff]
    %v844 = vld [vmem:[#allocation2 + $0x12] sm:$0xff]
    %v845 = vld [vmem:[#allocation2 + $0x2a] sm:$0xff]
    %v846 = vld [vmem:[#allocation2 + $0x32] sm:$0xff]
    %851 = vrot.lane.b32.xlu0 %v839, 4
    %v852 = vpop.permute.xlu0 %851
    %853 = vrot.lane.b32.xlu0 %v840, 4
    %v854 = vpop.permute.xlu0 %853
    %855 = vrot.lane.b32.xlu0 %v841, 4
    %v856 = vpop.permute.xlu0 %855
    %857 = vrot.lane.b32.xlu0 %v842, 4
    %v858 = vpop.permute.xlu0 %857
    %867 = vrot.lane.b32.xlu0 %v843, 8
    %v868 = vpop.permute.xlu0 %867
    %869 = vrot.lane.b32.xlu0 %v844, 8
    %v870 = vpop.permute.xlu0 %869
    %871 = vrot.lane.b32.xlu0 %v845, 8
    %v872 = vpop.permute.xlu0 %871
    %873 = vrot.lane.b32.xlu0 %v846, 8
    %v874 = vpop.permute.xlu0 %873
    %v879 = vsel %vm101, %v835, %v852
    %v880 = vsel %vm101, %v836, %v854
    %v881 = vsel %vm101, %v837, %v856
    %v882 = vsel %vm101, %v838, %v858
    %v883 = vsel %vm154, %v879, %v868
    %v884 = vsel %vm154, %v880, %v870
    %v885 = vsel %vm154, %v881, %v872
    %v886 = vsel %vm154, %v882, %v874
    %v887 = vld [vmem:[%s9] sm:$0xff]
    %v888 = vld [vmem:[%s9 + $0x8] sm:$0xf]
    %v889 = vld [vmem:[%s10] sm:$0x1]
    %v891 = vlaneseq
    %v892 = vshrl.u32 %v891, 7
    %v893 = vsub.s32 0, %v892
    %v894 = vrot.slane %v889, %v893
    %v897 = vsel %vm168, %v883, 0
    %v900 = vsel %vm168, %v884, 0
    %v903 = vsel %vm168, %v885, 0
    %v906 = vsel %vm168, %v886, 0
    %v909 = vsel %vm181, %v888, 0
    %911 = vmatprep.subr.mxu0 0.0
    %912 = vmatpush1.msra.mxu0 %v887
    %913 = vmatprep.subr.mxu0 0.0
    %914 = vmatpush1.msra.mxu0 %v909
    %915 = vmatprep.subr.mxu0 0.0
    %916 = vmatpush1.msra.mxu0 0.0
    %917 = vmatprep.subr.mxu0 0.0
    %918 = vmatpush1.msra.mxu0 0.0
    %919 = vmatprep.subr.mxu0 0.0
    %920 = vmatpush1.msra.mxu0 0.0
    %921 = vmatprep.subr.mxu0 0.0
    %922 = vmatpush1.msra.mxu0 0.0
    %923 = vmatprep.subr.mxu0 0.0
    %924 = vmatpush1.msra.mxu0 0.0
    %925 = vmatprep.subr.mxu0 0.0
    %926 = vmatpush1.msra.mxu0 0.0
    %927 = vmatprep.subr.mxu0 0.0
    %928 = vmatpush1.msra.mxu0 0.0
    %929 = vmatprep.subr.mxu0 0.0
    %930 = vmatpush1.msra.mxu0 0.0
    %931 = vmatprep.subr.mxu0 0.0
    %932 = vmatpush1.msra.mxu0 0.0
    %933 = vmatprep.subr.mxu0 0.0
    %934 = vmatpush1.msra.mxu0 0.0
    %935 = vmatprep.subr.mxu0 0.0
    %936 = vmatpush1.msra.mxu0 0.0
    %937 = vmatprep.subr.mxu0 0.0
    %938 = vmatpush1.msra.mxu0 0.0
    %939 = vmatprep.subr.mxu0 0.0
    %940 = vmatpush1.msra.mxu0 0.0
    %941 = vmatprep.subr.mxu0 0.0
    %942 = vmatpush1.msra.mxu0 0.0
    %943 = vmatprep.subr.mxu0 0.0
    %944 = vmatpush1.msra.mxu0 0.0
    %945 = vmatprep.subr.mxu0 0.0
    %946 = vmatpush1.msra.mxu0 0.0
    %947 = vmatprep.subr.mxu0 0.0
    %948 = vmatpush1.msra.mxu0 0.0
    %949 = vmatprep.subr.mxu0 0.0
    %950 = vmatpush1.msra.mxu0 0.0
    %951 = vmatprep.subr.mxu0 0.0
    %952 = vmatpush1.msra.mxu0 0.0
    %953 = vmatprep.subr.mxu0 0.0
    %954 = vmatpush1.msra.mxu0 0.0
    %955 = vmatprep.subr.mxu0 0.0
    %956 = vmatpush1.msra.mxu0 0.0
    %957 = vmatprep.subr.mxu0 0.0
    %958 = vmatpush1.msra.mxu0 0.0
    %959 = vmatprep.subr.mxu0 0.0
    %960 = vmatpush1.msra.mxu0 0.0
    %961 = vmatprep.subr.mxu0 0.0
    %962 = vmatpush1.msra.mxu0 0.0
    %963 = vmatprep.subr.mxu0 0.0
    %964 = vmatpush1.msra.mxu0 0.0
    %965 = vmatprep.subr.mxu0 0.0
    %966 = vmatpush1.msra.mxu0 0.0
    %967 = vmatprep.subr.mxu0 0.0
    %968 = vmatpush1.msra.mxu0 0.0
    %969 = vmatprep.subr.mxu0 0.0
    %970 = vmatpush1.msra.mxu0 0.0
    %971 = vmatprep.subr.mxu0 0.0
    %972 = vmatpush1.msra.mxu0 0.0
    %973 = vmatprep.subr.mxu0 0.0
    %974 = vmatpush1.msra.mxu0 0.0
    %975 = vmatprep.mubr.f32.mxu0 0.0
    %976 = vmatmul.mubr.f32.gmra.mrb[0].mxu0 %v897
    %v977 = vpop.f32.mrb[0].mxu0
    %v978 = vadd.f32 %v894, %v977
    %v979 = vpop.f32.mrb[0].mxu0
    %980 = vmatprep.mubr.f32.mxu0 0.0
    %981 = vmatmul.mubr.f32.gmra.mrb[0].mxu0 %v900
    %v982 = vpop.f32.mrb[0].mxu0
    %v983 = vadd.f32 %v894, %v982
    %v984 = vpop.f32.mrb[0].mxu0
    %985 = vmatprep.mubr.f32.mxu0 0.0
    %986 = vmatmul.mubr.f32.gmra.mrb[0].mxu0 %v903
    %v987 = vpop.f32.mrb[0].mxu0
    %v988 = vadd.f32 %v894, %v987
    %v989 = vpop.f32.mrb[0].mxu0
    %990 = vmatprep.mubr.f32.mxu0 0.0
    %991 = vmatmul.mubr.f32.gmra.mrb[0].mxu0 %v906
    %v992 = vpop.f32.mrb[0].mxu0
    %v993 = vadd.f32 %v894, %v992
    %v994 = vpop.f32.mrb[0].mxu0
    %995 = vdwg.mxu0
    %v996 = vmax.f32 %v978, 0.0
    %v997 = vmax.f32 %v983, 0.0
    %v998 = vmax.f32 %v988, 0.0
    %v999 = vmax.f32 %v993, 0.0
    %v1000 = vadd.f32 %v996, %v813
    %v1001 = vadd.f32 %v997, %v818
    %v1002 = vadd.f32 %v998, %v823
    %v1003 = vadd.f32 %v999, %v828
    %1004 = vst.msk [vmem:[%s13] sm:$0xff] %vm101, %v1000
    %1005 = vst.msk [vmem:[%s13 + $0x8] sm:$0xff] %vm101, %v1001
    %1006 = vst.msk [vmem:[%s13 + $0x10] sm:$0xff] %vm101, %v1002
    %1007 = vst.msk [vmem:[%s13 + $0x18] sm:$0xff] %vm101, %v1003
    // Predicated region
    $region70: #{tpu_custom_call.1} parent=1 // pred_check
      _
    $region71: #{tpu_custom_call.1} parent=1 // pred_check_branch
      %1009 = sbr.rel (0) target = $region73
    $region72: #{tpu_custom_call.1} parent=1 // pred_region
      _
    $region73: #{tpu_custom_call.1} parent=1 // pred_fallthru
      _
    // Predicated region
    $region74: #{tpu_custom_call.1} parent=1 // pred_check
      _
    $region75: #{tpu_custom_call.1} parent=1 // pred_check_branch
      %1011 = sbr.rel (0) target = $region77
    $region76: #{tpu_custom_call.1} parent=1 // pred_region
      _
    $region77: #{tpu_custom_call.1} parent=1 // pred_fallthru
      _
    %1012 = vsyncpa [#allocation4], 1
    %1013 = vsyncpa [#allocation6], 1
    %1014 = vsyncpa [#allocation9], 1

</llo_original>
